<compile_context>
chip_gen: v5e
topology: v5e:2x2
jax: 0.10.0
libtpu: 0.0.40
codegen_flags: <defaults>
</compile_context>

<pallas_src>
import functools

import jax
import jax.numpy as jnp
from jax.experimental import pallas as pl
from jax.experimental.pallas import tpu as pltpu


def _attention_kernel(x_ref, wq_ref, wk_ref, wv_ref, wo_ref, bo_ref,
                      o_ref, acc_ref, *, scale):
    """One (batch, head) step: project, attend, accumulate head's output-proj."""
    h = pl.program_id(1)

    @pl.when(h == 0)
    def _():
        acc_ref[...] = jnp.zeros_like(acc_ref)

    # bf16 operands for the MXU, f32 accumulation everywhere.
    x = x_ref[0].astype(jnp.bfloat16)      # (N, dim)
    wq = wq_ref[0].astype(jnp.bfloat16)    # (dim, dh)
    wk = wk_ref[0].astype(jnp.bfloat16)    # (dim, dh)
    wv = wv_ref[0].astype(jnp.bfloat16)    # (dim, dh)
    wo = wo_ref[0].astype(jnp.bfloat16)    # (dh, dim)

    q = jnp.dot(x, wq, preferred_element_type=jnp.float32)  # (N, dh) f32
    k = jnp.dot(x, wk, preferred_element_type=jnp.float32)  # (N, dh) f32
    v = jnp.dot(x, wv, preferred_element_type=jnp.float32)  # (N, dh) f32

    # scores = q @ k^T * scale   (contract on the head dim)
    s = jax.lax.dot_general(
        q.astype(jnp.bfloat16), k.astype(jnp.bfloat16),
        dimension_numbers=(((1,), (1,)), ((), ())),
        preferred_element_type=jnp.float32) * scale          # (N, N) f32

    # softmax over keys (f32 math; EUP reciprocal is a free slot).
    s_max = jnp.max(s, axis=-1, keepdims=True)
    p = jnp.exp(s - s_max)
    denom = jnp.sum(p, axis=-1, keepdims=True)
    p = p * pl.reciprocal(denom, approx=True)                # (N, N) f32

    o = jnp.dot(p.astype(jnp.bfloat16), v.astype(jnp.bfloat16),
                preferred_element_type=jnp.float32)          # (N, dh) f32

    # This head's contribution to the fused output projection.
    acc_ref[...] += jnp.dot(o.astype(jnp.bfloat16), wo,
                            preferred_element_type=jnp.float32)   # (N, dim)

    @pl.when(h == pl.num_programs(1) - 1)
    def _():
        out = acc_ref[...] + bo_ref[...].astype(jnp.float32)
        o_ref[0] = out.astype(o_ref.dtype)


def attention_pallas(x, w_qkv, w_out, b_out, *, heads, dim_head):
    """Equivalent of the PyTorch Attention.forward(x, mask=None).

    x:      (B, N, dim)
    w_qkv:  (dim, 3 * heads * dim_head)   -- to_qkv weight (no bias)
    w_out:  (heads * dim_head, dim)       -- to_out[0] weight
    b_out:  (dim,)                        -- to_out[0] bias
    """
    B, N, dim = x.shape
    inner = heads * dim_head
    assert w_qkv.shape == (dim, 3 * inner)
    assert w_out.shape == (inner, dim)

    # One-time host-side weight re-layout into per-head, lane-friendly slabs.
    w3 = w_qkv.reshape(dim, 3, heads, dim_head)
    wq = jnp.transpose(w3[:, 0], (1, 0, 2))        # (H, dim, dh)
    wk = jnp.transpose(w3[:, 1], (1, 0, 2))        # (H, dim, dh)
    wv = jnp.transpose(w3[:, 2], (1, 0, 2))        # (H, dim, dh)
    wo = w_out.reshape(heads, dim_head, dim)       # (H, dh, dim)
    bo = b_out.reshape(1, dim)

    kernel = functools.partial(_attention_kernel, scale=dim_head ** -0.5)

    return pl.pallas_call(
        kernel,
        out_shape=jax.ShapeDtypeStruct((B, N, dim), x.dtype),
        grid_spec=pltpu.PrefetchScalarGridSpec(
            num_scalar_prefetch=0,
            grid=(B, heads),
            in_specs=[
                # x tile is constant across the head axis -> stays resident.
                pl.BlockSpec((1, N, dim), lambda b, h: (b, 0, 0)),
                pl.BlockSpec((1, dim, dim_head), lambda b, h: (h, 0, 0)),
                pl.BlockSpec((1, dim, dim_head), lambda b, h: (h, 0, 0)),
                pl.BlockSpec((1, dim, dim_head), lambda b, h: (h, 0, 0)),
                pl.BlockSpec((1, dim_head, dim), lambda b, h: (h, 0, 0)),
                pl.BlockSpec((1, dim), lambda b, h: (0, 0)),
            ],
            out_specs=pl.BlockSpec((1, N, dim), lambda b, h: (b, 0, 0)),
            scratch_shapes=[pltpu.VMEM((N, dim), jnp.float32)],
        ),
        compiler_params=pltpu.CompilerParams(
            dimension_semantics=("parallel", "arbitrary"),
            vmem_limit_bytes=64 * 1024 * 1024,
        ),
    )(x, wq, wk, wv, wo, bo)


if __name__ == "__main__":
    key = jax.random.PRNGKey(0)

    # Module defaults: heads=8, dim_head=64 -> inner_dim=512.  Use 128-multiple
    # model/seq dims per the performance guidance (lane-dense tiles).
    B, N, DIM = 2, 128, 128
    HEADS, DIM_HEAD = 8, 64
    INNER = HEADS * DIM_HEAD

    kx, kqkv, kout, kb = jax.random.split(key, 4)
    x = jax.random.normal(kx, (B, N, DIM), dtype=jnp.float32)
    w_qkv = jax.random.normal(kqkv, (DIM, 3 * INNER), jnp.float32) / jnp.sqrt(DIM)
    w_out = jax.random.normal(kout, (INNER, DIM), jnp.float32) / jnp.sqrt(INNER)
    b_out = jax.random.normal(kb, (DIM,), jnp.float32) * 0.02

    out = attention_pallas(x, w_qkv, w_out, b_out, heads=HEADS, dim_head=DIM_HEAD)
    out = jax.block_until_ready(out)

    # Pure-JAX f32 reference of the PyTorch forward (mask=None, dropout=0).
    qkv = x @ w_qkv
    q, k, v = jnp.split(qkv, 3, axis=-1)
    split_heads = lambda t: jnp.transpose(
        t.reshape(B, N, HEADS, DIM_HEAD), (0, 2, 1, 3))
    q, k, v = map(split_heads, (q, k, v))
    dots = jnp.einsum("bhid,bhjd->bhij", q, k) * (DIM_HEAD ** -0.5)
    attn = jax.nn.softmax(dots, axis=-1)
    o = jnp.einsum("bhij,bhjd->bhid", attn, v)
    o = jnp.transpose(o, (0, 2, 1, 3)).reshape(B, N, INNER)
    ref = o @ w_out + b_out

    max_err = float(jnp.max(jnp.abs(out - ref)))
    assert jnp.allclose(out, ref, atol=2e-2, rtol=2e-2), (
        f"mismatch vs reference, max abs err = {max_err}")
    print("KERNEL_OK")
</pallas_src>

<mosaic_0001>
module attributes {stable_mosaic.version = 11 : i64} {
  func.func @_attention_kernel(%arg0: i32, %arg1: i32, %arg2: memref<1x128x128xf32, #tpu.memory_space<vmem>>, %arg3: memref<1x128x64xf32, #tpu.memory_space<vmem>>, %arg4: memref<1x128x64xf32, #tpu.memory_space<vmem>>, %arg5: memref<1x128x64xf32, #tpu.memory_space<vmem>>, %arg6: memref<1x64x128xf32, #tpu.memory_space<vmem>>, %arg7: memref<1x128xf32, #tpu.memory_space<vmem>>, %arg8: memref<1x128x128xf32, #tpu.memory_space<vmem>>, %arg9: memref<128x128xf32, #tpu.memory_space<vmem>>) attributes {dimension_semantics = [#tpu.dimension_semantics<parallel>, #tpu.dimension_semantics<arbitrary>], iteration_bounds = array<i64: 2, 8>, scalar_prefetch = 0 : i64, scratch_operands = 1 : i64, tpu.core_type = #tpu.core_type<tc>, window_params = [{transform_indices = @transform_0, window_bounds = array<i64: 1, 128, 128>}, {transform_indices = @transform_1, window_bounds = array<i64: 1, 128, 64>}, {transform_indices = @transform_2, window_bounds = array<i64: 1, 128, 64>}, {transform_indices = @transform_3, window_bounds = array<i64: 1, 128, 64>}, {transform_indices = @transform_4, window_bounds = array<i64: 1, 64, 128>}, {pipeline_mode = #tpu.pipeline_mode<synchronous>, transform_indices = @transform_5, window_bounds = array<i64: 1, 128>}, {transform_indices = @transform_6, window_bounds = array<i64: 1, 128, 128>}]} {
    %c0_i32 = arith.constant 0 : i32
    %0 = arith.cmpi eq, %arg1, %c0_i32 : i32
    %1 = arith.extui %0 : i1 to i32
    %c0_i32_0 = arith.constant 0 : i32
    %2 = arith.cmpi ne, %1, %c0_i32_0 : i32
    scf.if %2 {
      %cst_28 = arith.constant 0.000000e+00 : f32
      %47 = vector.broadcast %cst_28 : f32 to vector<128x128xf32>
      %c0_29 = arith.constant 0 : index
      %c0_30 = arith.constant 0 : index
      %48 = vector.load %arg9[%c0_29, %c0_30] : memref<128x128xf32, #tpu.memory_space<vmem>>, vector<128x128xf32>
      tpu.vector_store %arg9[%c0_29, %c0_30], %47 {strides = array<i32>} : memref<128x128xf32, #tpu.memory_space<vmem>>, vector<128x128xf32>,
    } else {
    }
    %c0 = arith.constant 0 : index
    %c0_1 = arith.constant 0 : index
    %c0_2 = arith.constant 0 : index
    %3 = vector.load %arg2[%c0, %c0_1, %c0_2] : memref<1x128x128xf32, #tpu.memory_space<vmem>>, vector<1x128x128xf32>
    %4 = vector.shape_cast %3 : vector<1x128x128xf32> to vector<128x128xf32>
    %5 = arith.truncf %4 : vector<128x128xf32> to vector<128x128xbf16>
    %c0_3 = arith.constant 0 : index
    %c0_4 = arith.constant 0 : index
    %c0_5 = arith.constant 0 : index
    %6 = vector.load %arg3[%c0_3, %c0_4, %c0_5] : memref<1x128x64xf32, #tpu.memory_space<vmem>>, vector<1x128x64xf32>
    %7 = vector.shape_cast %6 : vector<1x128x64xf32> to vector<128x64xf32>
    %8 = arith.truncf %7 : vector<128x64xf32> to vector<128x64xbf16>
    %c0_6 = arith.constant 0 : index
    %c0_7 = arith.constant 0 : index
    %c0_8 = arith.constant 0 : index
    %9 = vector.load %arg4[%c0_6, %c0_7, %c0_8] : memref<1x128x64xf32, #tpu.memory_space<vmem>>, vector<1x128x64xf32>
    %10 = vector.shape_cast %9 : vector<1x128x64xf32> to vector<128x64xf32>
    %11 = arith.truncf %10 : vector<128x64xf32> to vector<128x64xbf16>
    %c0_9 = arith.constant 0 : index
    %c0_10 = arith.constant 0 : index
    %c0_11 = arith.constant 0 : index
    %12 = vector.load %arg5[%c0_9, %c0_10, %c0_11] : memref<1x128x64xf32, #tpu.memory_space<vmem>>, vector<1x128x64xf32>
    %13 = vector.shape_cast %12 : vector<1x128x64xf32> to vector<128x64xf32>
    %14 = arith.truncf %13 : vector<128x64xf32> to vector<128x64xbf16>
    %c0_12 = arith.constant 0 : index
    %c0_13 = arith.constant 0 : index
    %c0_14 = arith.constant 0 : index
    %15 = vector.load %arg6[%c0_12, %c0_13, %c0_14] : memref<1x64x128xf32, #tpu.memory_space<vmem>>, vector<1x64x128xf32>
    %16 = vector.shape_cast %15 : vector<1x64x128xf32> to vector<64x128xf32>
    %17 = arith.truncf %16 : vector<64x128xf32> to vector<64x128xbf16>
    %cst = arith.constant dense<0.000000e+00> : vector<128x64xf32>
    %18 = tpu.matmul %5, %8, %cst {dimension_numbers = #tpu.dot_dimension_numbers<[1], [0], [0], [1], [0, 0, 1, 1], [], []>} : vector<128x128xbf16>, vector<128x64xbf16>, vector<128x64xf32> -> vector<128x64xf32>
    %cst_15 = arith.constant dense<0.000000e+00> : vector<128x64xf32>
    %19 = tpu.matmul %5, %11, %cst_15 {dimension_numbers = #tpu.dot_dimension_numbers<[1], [0], [0], [1], [0, 0, 1, 1], [], []>} : vector<128x128xbf16>, vector<128x64xbf16>, vector<128x64xf32> -> vector<128x64xf32>
    %cst_16 = arith.constant dense<0.000000e+00> : vector<128x64xf32>
    %20 = tpu.matmul %5, %14, %cst_16 {dimension_numbers = #tpu.dot_dimension_numbers<[1], [0], [0], [1], [0, 0, 1, 1], [], []>} : vector<128x128xbf16>, vector<128x64xbf16>, vector<128x64xf32> -> vector<128x64xf32>
    %21 = arith.truncf %18 : vector<128x64xf32> to vector<128x64xbf16>
    %22 = arith.truncf %19 : vector<128x64xf32> to vector<128x64xbf16>
    %cst_17 = arith.constant dense<0.000000e+00> : vector<128x128xf32>
    %23 = tpu.matmul %21, %22, %cst_17 {dimension_numbers = #tpu.dot_dimension_numbers<[1], [1], [0], [0], [0, 0, 1, 0], [], []>} : vector<128x64xbf16>, vector<128x64xbf16>, vector<128x128xf32> -> vector<128x128xf32>
    %cst_18 = arith.constant 1.250000e-01 : f32
    %24 = vector.broadcast %cst_18 : f32 to vector<128x128xf32>
    %25 = arith.mulf %23, %24 : vector<128x128xf32>
    %cst_19 = arith.constant dense<0xFF800000> : vector<128xf32>
    %26 = vector.multi_reduction <maximumf>, %25, %cst_19 [1] : vector<128x128xf32> to vector<128xf32>
    %27 = vector.shape_cast %26 : vector<128xf32> to vector<128x1xf32>
    %28 = vector.broadcast %27 : vector<128x1xf32> to vector<128x128xf32>
    %29 = arith.subf %25, %28 : vector<128x128xf32>
    %30 = math.exp %29 : vector<128x128xf32>
    %cst_20 = arith.constant dense<0.000000e+00> : vector<128xf32>
    %31 = vector.multi_reduction <add>, %30, %cst_20 [1] : vector<128x128xf32> to vector<128xf32>
    %32 = vector.shape_cast %31 : vector<128xf32> to vector<128x1xf32>
    %33 = tpu.reciprocal %32 {approx = true} : vector<128x1xf32> -> vector<128x1xf32>
    %34 = vector.broadcast %33 : vector<128x1xf32> to vector<128x128xf32>
    %35 = arith.mulf %30, %34 : vector<128x128xf32>
    %36 = arith.truncf %35 : vector<128x128xf32> to vector<128x128xbf16>
    %37 = arith.truncf %20 : vector<128x64xf32> to vector<128x64xbf16>
    %cst_21 = arith.constant dense<0.000000e+00> : vector<128x64xf32>
    %38 = tpu.matmul %36, %37, %cst_21 {dimension_numbers = #tpu.dot_dimension_numbers<[1], [0], [0], [1], [0, 0, 1, 1], [], []>} : vector<128x128xbf16>, vector<128x64xbf16>, vector<128x64xf32> -> vector<128x64xf32>
    %c0_22 = arith.constant 0 : index
    %c0_23 = arith.constant 0 : index
    %39 = vector.load %arg9[%c0_22, %c0_23] : memref<128x128xf32, #tpu.memory_space<vmem>>, vector<128x128xf32>
    %40 = arith.truncf %38 : vector<128x64xf32> to vector<128x64xbf16>
    %cst_24 = arith.constant dense<0.000000e+00> : vector<128x128xf32>
    %41 = tpu.matmul %40, %17, %cst_24 {dimension_numbers = #tpu.dot_dimension_numbers<[1], [0], [0], [1], [0, 0, 1, 1], [], []>} : vector<128x64xbf16>, vector<64x128xbf16>, vector<128x128xf32> -> vector<128x128xf32>
    %42 = arith.addf %39, %41 : vector<128x128xf32>
    %c0_25 = arith.constant 0 : index
    %c0_26 = arith.constant 0 : index
    %43 = vector.load %arg9[%c0_25, %c0_26] : memref<128x128xf32, #tpu.memory_space<vmem>>, vector<128x128xf32>
    tpu.vector_store %arg9[%c0_25, %c0_26], %42 {strides = array<i32>} : memref<128x128xf32, #tpu.memory_space<vmem>>, vector<128x128xf32>,
    %c7_i32 = arith.constant 7 : i32
    %44 = arith.cmpi eq, %arg1, %c7_i32 : i32
    %45 = arith.extui %44 : i1 to i32
    %c0_i32_27 = arith.constant 0 : i32
    %46 = arith.cmpi ne, %45, %c0_i32_27 : i32
    scf.if %46 {
      %c0_28 = arith.constant 0 : index
      %c0_29 = arith.constant 0 : index
      %47 = vector.load %arg9[%c0_28, %c0_29] : memref<128x128xf32, #tpu.memory_space<vmem>>, vector<128x128xf32>
      %c0_30 = arith.constant 0 : index
      %c0_31 = arith.constant 0 : index
      %48 = vector.load %arg7[%c0_30, %c0_31] : memref<1x128xf32, #tpu.memory_space<vmem>>, vector<1x128xf32>
      %49 = vector.broadcast %48 : vector<1x128xf32> to vector<128x128xf32>
      %50 = arith.addf %47, %49 : vector<128x128xf32>
      %c0_32 = arith.constant 0 : index
      %c0_33 = arith.constant 0 : index
      %c0_34 = arith.constant 0 : index
      %51 = vector.load %arg8[%c0_32, %c0_33, %c0_34] : memref<1x128x128xf32, #tpu.memory_space<vmem>>, vector<1x128x128xf32>
      %52 = vector.shape_cast %51 : vector<1x128x128xf32> to vector<128x128xf32>
      %53 = vector.shape_cast %50 : vector<128x128xf32> to vector<1x128x128xf32>
      tpu.vector_store %arg8[%c0_32, %c0_33, %c0_34], %53 {strides = array<i32>} : memref<1x128x128xf32, #tpu.memory_space<vmem>>, vector<1x128x128xf32>,
    } else {
    }
    return
  }
  func.func @transform_0(%arg0: i32, %arg1: i32) -> (i32, i32, i32) {
    %c0_i32 = arith.constant 0 : i32
    %c0_i32_0 = arith.constant 0 : i32
    %c0_i32_1 = arith.constant 0 : i32
    return %arg0, %c0_i32, %c0_i32_0 : i32, i32, i32
  }
  func.func @transform_1(%arg0: i32, %arg1: i32) -> (i32, i32, i32) {
    %c0_i32 = arith.constant 0 : i32
    %c0_i32_0 = arith.constant 0 : i32
    %c0_i32_1 = arith.constant 0 : i32
    return %arg1, %c0_i32, %c0_i32_0 : i32, i32, i32
  }
  func.func @transform_2(%arg0: i32, %arg1: i32) -> (i32, i32, i32) {
    %c0_i32 = arith.constant 0 : i32
    %c0_i32_0 = arith.constant 0 : i32
    %c0_i32_1 = arith.constant 0 : i32
    return %arg1, %c0_i32, %c0_i32_0 : i32, i32, i32
  }
  func.func @transform_3(%arg0: i32, %arg1: i32) -> (i32, i32, i32) {
    %c0_i32 = arith.constant 0 : i32
    %c0_i32_0 = arith.constant 0 : i32
    %c0_i32_1 = arith.constant 0 : i32
    return %arg1, %c0_i32, %c0_i32_0 : i32, i32, i32
  }
  func.func @transform_4(%arg0: i32, %arg1: i32) -> (i32, i32, i32) {
    %c0_i32 = arith.constant 0 : i32
    %c0_i32_0 = arith.constant 0 : i32
    %c0_i32_1 = arith.constant 0 : i32
    return %arg1, %c0_i32, %c0_i32_0 : i32, i32, i32
  }
  func.func @transform_5(%arg0: i32, %arg1: i32) -> (i32, i32) {
    %c0_i32 = arith.constant 0 : i32
    %c0_i32_0 = arith.constant 0 : i32
    %c0_i32_1 = arith.constant 0 : i32
    return %c0_i32, %c0_i32_0 : i32, i32
  }
  func.func @transform_6(%arg0: i32, %arg1: i32) -> (i32, i32, i32) {
    %c0_i32 = arith.constant 0 : i32
    %c0_i32_0 = arith.constant 0 : i32
    %c0_i32_1 = arith.constant 0 : i32
    return %arg0, %c0_i32, %c0_i32_0 : i32, i32, i32
  }
}

</mosaic_0001>

<llo_original>
// kernel: tpu_custom_call.1
$region0: #{tpu_custom_call.1}
  #allocation0 [shape = 'u32[]', space=smem, size = 0x4, offset = 0x4, fixed_abs, tag = 'smem constant byte address 0x4 - core index']
  #allocation1 [shape = 'u32[72,128]{1,0:T(1,128)}', space=vmem, size = 0x9000, scoped, tag = 'internal scratch']
  #allocation2 [shape = 'f32[128,128]{1,0:T(8,128)}', space=vmem, size = 0x10000, scoped, tag = 'scratch operand']
  %s0 = inlined_call_operand.vmem [shape: f32[2,128,128], index: 0, kind: input, shape index: {}]
  %s1 = inlined_call_operand.vmem [shape: f32[8,128,64], index: 1, kind: input, shape index: {}]
  %s2 = inlined_call_operand.vmem [shape: f32[8,128,64], index: 2, kind: input, shape index: {}]
  %s3 = inlined_call_operand.vmem [shape: f32[8,128,64], index: 3, kind: input, shape index: {}]
  %s4 = inlined_call_operand.vmem [shape: f32[8,64,128], index: 4, kind: input, shape index: {}]
  %s5 = inlined_call_operand.vmem [shape: f32[1,128], index: 5, kind: input, shape index: {}]
  %s6 = inlined_call_operand.hbm [shape: f32[2,128,128], index: 6, kind: output, shape index: {}]
  %s7 = sld [smem:[#allocation0]]
  $region65: #{tpu_custom_call.1} parent=0
    _
  %s9 = ssub.s32 1, %s7
  %s10 = scalar_select 0, %s9, %s7
  $region1: #{tpu_custom_call.1} parent=0
    #allocation3 [shape = 'u8[131072]{0}', space=vmem, size = 0x20000, scoped, tag = 'output window, operand 0']
    #allocation4 [shape = 's32[2]{0}', space=sflag, size = 0x8, scoped, tag = 'scoped memory for tpu_custom_call.1']
    %11 = vsyncpa [#allocation4], 0
    %s12 = scalar_lea.sflag [#allocation4], 1
    %13 = vsyncpa %s12, 0
    loop: start=0, step=1, limit=18
    $region2: #{tpu_custom_call.1} parent=1 // loop_pre_header
      _
    $region3: #{tpu_custom_call.1} parent=1 // loop_header
      %s15 = sphi 0, %s19
      %p16 = scmp.ge.s32.totalorder %s15, 18
      %s22 = sphi 0, %s34
      %s23 = sphi 0, %s30
      %s24 = sphi 0, %s22
      %s25 = sphi 0, %s23
      %s26 = sphi 0, %s24
      %s27 = sphi 0, %s25
      %s37 = sphi 0, %s39
      %s40 = sphi 0, %s37
      %s41 = sphi 0, %s40
      %s57 = sphi 0, %s41
      %s63 = sphi 0, %s65
      %s66 = sphi 0, %s63
      %s67 = sphi 0, %s66
      %s83 = sphi 0, %s67
      %s89 = sphi 0, %s91
      %s92 = sphi 0, %s89
      %s93 = sphi 0, %s92
      %s109 = sphi 0, %s93
      %s115 = sphi 0, %s117
      %s118 = sphi 0, %s115
      %s119 = sphi 0, %s118
      %s135 = sphi 0, %s119
      %s141 = sphi 0, %s143
      %s144 = sphi 0, %s141
      %s145 = sphi 0, %s144
      %s161 = sphi 0, %s145
      %s165 = sphi 0, %s165
      %s167 = sphi 0, %s165
      %s168 = sphi 0, %s167
      %s182 = sphi 0, %s168
      %s188 = sphi 0, %s190
      %s191 = sphi 0, %s188
      %s192 = sphi 0, %s191
      %s208 = sphi 0, %s192
    $region4: #{tpu_custom_call.1} parent=1 // loop_header_branch
      %18 = sbr.rel (%p16) target = $region8
    $region5: #{tpu_custom_call.1} parent=1 // loop_body
      %s20 = ssub.s32 %s15, 1
      %s21 = ssub.s32 %s15, 2
      %s28 = sadd.s32 1, %s23
      %p29 = scmp.ge.s32.totalorder %s28, 8
      %s30 = scalar_select %p29, 0, %s28
      %s31 = sadd.s32 1, %s22
      %s32 = scalar_select %p29, %s31, %s22
      %p33 = scmp.ge.s32.totalorder %s32, 2
      %s34 = scalar_select %p33, 0, %s32
      %s35 = ssub.s32 %s22, %s34
      %p36 = scmp.eq.s32.totalorder %s35, 0
      %s38 = sadd.s32 %s37, 1
      %s39 = scalar_select %p36, %s37, %s38
      %p42 = pneg %p36
      %p43 = scmp.eq.s32.totalorder %s15, 15
      %p44 = por %p42, %p43
      %p45 = scmp.ne.s32.totalorder %s37, %s40
      %p46 = scmp.eq.s32.totalorder %s15, 0
      %p47 = por %p45, %p46
      %p48 = scmp.ne.s32.totalorder %s37, %s40
      %p49 = scmp.eq.s32.totalorder %s20, 15
      %p50 = por %p48, %p49
      %p51 = scmp.ne.s32.totalorder %s40, %s41
      %p52 = scmp.eq.s32.totalorder %s20, 0
      %p53 = por %p51, %p52
      %p54 = scmp.ne.s32.totalorder %s40, %s41
      %p55 = scmp.eq.s32.totalorder %s21, 15
      %p56 = por %p54, %p55
      %p58 = scmp.ne.s32.totalorder %s41, %s57
      %p59 = scmp.eq.s32.totalorder %s21, 0
      %p60 = por %p58, %p59
      %s61 = ssub.s32 %s23, %s30
      %p62 = scmp.eq.s32.totalorder %s61, 0
      %s64 = sadd.s32 %s63, 1
      %s65 = scalar_select %p62, %s63, %s64
      %p68 = pneg %p62
      %p69 = scmp.eq.s32.totalorder %s15, 15
      %p70 = por %p68, %p69
      %p71 = scmp.ne.s32.totalorder %s63, %s66
      %p72 = scmp.eq.s32.totalorder %s15, 0
      %p73 = por %p71, %p72
      %p74 = scmp.ne.s32.totalorder %s63, %s66
      %p75 = scmp.eq.s32.totalorder %s20, 15
      %p76 = por %p74, %p75
      %p77 = scmp.ne.s32.totalorder %s66, %s67
      %p78 = scmp.eq.s32.totalorder %s20, 0
      %p79 = por %p77, %p78
      %p80 = scmp.ne.s32.totalorder %s66, %s67
      %p81 = scmp.eq.s32.totalorder %s21, 15
      %p82 = por %p80, %p81
      %p84 = scmp.ne.s32.totalorder %s67, %s83
      %p85 = scmp.eq.s32.totalorder %s21, 0
      %p86 = por %p84, %p85
      %s87 = ssub.s32 %s23, %s30
      %p88 = scmp.eq.s32.totalorder %s87, 0
      %s90 = sadd.s32 %s89, 1
      %s91 = scalar_select %p88, %s89, %s90
      %p94 = pneg %p88
      %p95 = scmp.eq.s32.totalorder %s15, 15
      %p96 = por %p94, %p95
      %p97 = scmp.ne.s32.totalorder %s89, %s92
      %p98 = scmp.eq.s32.totalorder %s15, 0
      %p99 = por %p97, %p98
      %p100 = scmp.ne.s32.totalorder %s89, %s92
      %p101 = scmp.eq.s32.totalorder %s20, 15
      %p102 = por %p100, %p101
      %p103 = scmp.ne.s32.totalorder %s92, %s93
      %p104 = scmp.eq.s32.totalorder %s20, 0
      %p105 = por %p103, %p104
      %p106 = scmp.ne.s32.totalorder %s92, %s93
      %p107 = scmp.eq.s32.totalorder %s21, 15
      %p108 = por %p106, %p107
      %p110 = scmp.ne.s32.totalorder %s93, %s109
      %p111 = scmp.eq.s32.totalorder %s21, 0
      %p112 = por %p110, %p111
      %s113 = ssub.s32 %s23, %s30
      %p114 = scmp.eq.s32.totalorder %s113, 0
      %s116 = sadd.s32 %s115, 1
      %s117 = scalar_select %p114, %s115, %s116
      %p120 = pneg %p114
      %p121 = scmp.eq.s32.totalorder %s15, 15
      %p122 = por %p120, %p121
      %p123 = scmp.ne.s32.totalorder %s115, %s118
      %p124 = scmp.eq.s32.totalorder %s15, 0
      %p125 = por %p123, %p124
      %p126 = scmp.ne.s32.totalorder %s115, %s118
      %p127 = scmp.eq.s32.totalorder %s20, 15
      %p128 = por %p126, %p127
      %p129 = scmp.ne.s32.totalorder %s118, %s119
      %p130 = scmp.eq.s32.totalorder %s20, 0
      %p131 = por %p129, %p130
      %p132 = scmp.ne.s32.totalorder %s118, %s119
      %p133 = scmp.eq.s32.totalorder %s21, 15
      %p134 = por %p132, %p133
      %p136 = scmp.ne.s32.totalorder %s119, %s135
      %p137 = scmp.eq.s32.totalorder %s21, 0
      %p138 = por %p136, %p137
      %s139 = ssub.s32 %s23, %s30
      %p140 = scmp.eq.s32.totalorder %s139, 0
      %s142 = sadd.s32 %s141, 1
      %s143 = scalar_select %p140, %s141, %s142
      %p146 = pneg %p140
      %p147 = scmp.eq.s32.totalorder %s15, 15
      %p148 = por %p146, %p147
      %p149 = scmp.ne.s32.totalorder %s141, %s144
      %p150 = scmp.eq.s32.totalorder %s15, 0
      %p151 = por %p149, %p150
      %p152 = scmp.ne.s32.totalorder %s141, %s144
      %p153 = scmp.eq.s32.totalorder %s20, 15
      %p154 = por %p152, %p153
      %p155 = scmp.ne.s32.totalorder %s144, %s145
      %p156 = scmp.eq.s32.totalorder %s20, 0
      %p157 = por %p155, %p156
      %p158 = scmp.ne.s32.totalorder %s144, %s145
      %p159 = scmp.eq.s32.totalorder %s21, 15
      %p160 = por %p158, %p159
      %p162 = scmp.ne.s32.totalorder %s145, %s161
      %p163 = scmp.eq.s32.totalorder %s21, 0
      %p164 = por %p162, %p163
      %s166 = sadd.s32 %s165, 1
      %p169 = scmp.eq.s32.totalorder %s15, 15
      %p170 = scmp.ne.s32.totalorder %s165, %s167
      %p171 = scmp.eq.s32.totalorder %s15, 0
      %p172 = por %p170, %p171
      %p173 = scmp.ne.s32.totalorder %s165, %s167
      %p174 = scmp.eq.s32.totalorder %s20, 15
      %p175 = por %p173, %p174
      %p176 = scmp.ne.s32.totalorder %s167, %s168
      %p177 = scmp.eq.s32.totalorder %s20, 0
      %p178 = por %p176, %p177
      %p179 = scmp.ne.s32.totalorder %s167, %s168
      %p180 = scmp.eq.s32.totalorder %s21, 15
      %p181 = por %p179, %p180
      %p183 = scmp.ne.s32.totalorder %s168, %s182
      %p184 = scmp.eq.s32.totalorder %s21, 0
      %p185 = por %p183, %p184
      %s186 = ssub.s32 %s22, %s34
      %p187 = scmp.eq.s32.totalorder %s186, 0
      %s189 = sadd.s32 %s188, 1
      %s190 = scalar_select %p187, %s188, %s189
      %p193 = pneg %p187
      %p194 = scmp.eq.s32.totalorder %s15, 15
      %p195 = por %p193, %p194
      %p196 = scmp.ne.s32.totalorder %s188, %s191
      %p197 = scmp.eq.s32.totalorder %s15, 0
      %p198 = por %p196, %p197
      %p199 = scmp.ne.s32.totalorder %s188, %s191
      %p200 = scmp.eq.s32.totalorder %s20, 15
      %p201 = por %p199, %p200
      %p202 = scmp.ne.s32.totalorder %s191, %s192
      %p203 = scmp.eq.s32.totalorder %s20, 0
      %p204 = por %p202, %p203
      %p205 = scmp.ne.s32.totalorder %s191, %s192
      %p206 = scmp.eq.s32.totalorder %s21, 15
      %p207 = por %p205, %p206
      %p209 = scmp.ne.s32.totalorder %s192, %s208
      %p210 = scmp.eq.s32.totalorder %s21, 0
      %p211 = por %p209, %p210
      %p212 = scmp.le.s32.totalorder 1, %s15
      %p213 = scmp.lt.s32.totalorder %s15, 17
      %p214 = pnand %p212, %p213
      %p215 = pneg %p214
      // Predicated region
      $region9: #{tpu_custom_call.1} parent=5 // pred_check
        _
      $region10: #{tpu_custom_call.1} parent=5 // pred_check_branch
        %217 = sbr.rel (%p214) target = $region12
      $region11: #{tpu_custom_call.1} parent=5 // pred_region
        %s218 = ssub.s32 %s15, 1
        // Predicated region
        $region13: #{tpu_custom_call.1} parent=11 // pred_check
          %p219 = pneg %p178
        $region14: #{tpu_custom_call.1} parent=11 // pred_check_branch
          %221 = sbr.rel (%p219) target = $region16
        $region15: #{tpu_custom_call.1} parent=11 // pred_region
          _
        $region16: #{tpu_custom_call.1} parent=11 // pred_fallthru
          _
      $region12: #{tpu_custom_call.1} parent=5 // pred_fallthru
        _
      %p222 = scmp.lt.s32.totalorder %s15, 16
      // Predicated region
      $region17: #{tpu_custom_call.1} parent=5 // pred_check
        %p223 = pneg %p222
      $region18: #{tpu_custom_call.1} parent=5 // pred_check_branch
        %225 = sbr.rel (%p223) target = $region20
      $region19: #{tpu_custom_call.1} parent=5 // pred_region
        // Predicated region
        $region21: #{tpu_custom_call.1} parent=19 // pred_check
          %p226 = pneg %p47
        $region22: #{tpu_custom_call.1} parent=19 // pred_check_branch
          %228 = sbr.rel (%p226) target = $region24
        $region23: #{tpu_custom_call.1} parent=19 // pred_region
          %p229 = scmp.lt.s32.totalorder %s22, 1
          %s230 = scalar_select %p229, %s22, 1
          %s231 = smul.addr %s230, 16
          %s232 = smul.addr %s231, 8
          %s233 = scalar_lea.vmem %s0, %s232
        $region24: #{tpu_custom_call.1} parent=19 // pred_fallthru
          _
        // Predicated region
        $region25: #{tpu_custom_call.1} parent=19 // pred_check
          %p234 = pneg %p73
        $region26: #{tpu_custom_call.1} parent=19 // pred_check_branch
          %236 = sbr.rel (%p234) target = $region28
        $region27: #{tpu_custom_call.1} parent=19 // pred_region
          %p237 = scmp.lt.s32.totalorder %s23, 7
          %s238 = scalar_select %p237, %s23, 7
          %s239 = smul.addr %s238, 16
          %s240 = smul.addr %s239, 8
          %s241 = scalar_lea.vmem %s1, %s240
        $region28: #{tpu_custom_call.1} parent=19 // pred_fallthru
          _
        // Predicated region
        $region29: #{tpu_custom_call.1} parent=19 // pred_check
          %p242 = pneg %p99
        $region30: #{tpu_custom_call.1} parent=19 // pred_check_branch
          %244 = sbr.rel (%p242) target = $region32
        $region31: #{tpu_custom_call.1} parent=19 // pred_region
          %p245 = scmp.lt.s32.totalorder %s23, 7
          %s246 = scalar_select %p245, %s23, 7
          %s247 = smul.addr %s246, 16
          %s248 = smul.addr %s247, 8
          %s249 = scalar_lea.vmem %s2, %s248
        $region32: #{tpu_custom_call.1} parent=19 // pred_fallthru
          _
        // Predicated region
        $region33: #{tpu_custom_call.1} parent=19 // pred_check
          %p250 = pneg %p125
        $region34: #{tpu_custom_call.1} parent=19 // pred_check_branch
          %252 = sbr.rel (%p250) target = $region36
        $region35: #{tpu_custom_call.1} parent=19 // pred_region
          %p253 = scmp.lt.s32.totalorder %s23, 7
          %s254 = scalar_select %p253, %s23, 7
          %s255 = smul.addr %s254, 16
          %s256 = smul.addr %s255, 8
          %s257 = scalar_lea.vmem %s3, %s256
        $region36: #{tpu_custom_call.1} parent=19 // pred_fallthru
          _
        // Predicated region
        $region37: #{tpu_custom_call.1} parent=19 // pred_check
          %p258 = pneg %p151
        $region38: #{tpu_custom_call.1} parent=19 // pred_check_branch
          %260 = sbr.rel (%p258) target = $region40
        $region39: #{tpu_custom_call.1} parent=19 // pred_region
          %p261 = scmp.lt.s32.totalorder %s23, 7
          %s262 = scalar_select %p261, %s23, 7
          %s263 = smul.addr %s262, 8
          %s264 = smul.addr %s263, 8
          %s265 = scalar_lea.vmem %s4, %s264
        $region40: #{tpu_custom_call.1} parent=19 // pred_fallthru
          _
      $region20: #{tpu_custom_call.1} parent=5 // pred_fallthru
        _
      %p266 = scmp.le.s32.totalorder 1, %s15
      %p267 = scmp.lt.s32.totalorder %s15, 17
      %p268 = pnand %p266, %p267
      %p269 = pneg %p268
      // Predicated region
      $region41: #{tpu_custom_call.1} parent=5 // pred_check
        _
      $region42: #{tpu_custom_call.1} parent=5 // pred_check_branch
        %271 = sbr.rel (%p268) target = $region44
      $region43: #{tpu_custom_call.1} parent=5 // pred_region
        %s272 = ssub.s32 %s15, 1
        %p273 = scmp.lt.s32.totalorder %s24, 1
        %s274 = scalar_select %p273, %s24, 1
        %s275 = smul.addr %s274, 16
        %s276 = smul.addr %s275, 8
        %s277 = scalar_lea.vmem %s0, %s276
        %p278 = pneg %p53
        %p279 = pneg %p50
        %p280 = scmp.lt.s32.totalorder %s25, 7
        %s281 = scalar_select %p280, %s25, 7
        %s282 = smul.addr %s281, 16
        %s283 = smul.addr %s282, 8
        %s284 = scalar_lea.vmem %s1, %s283
        %p285 = pneg %p79
        %p286 = pneg %p76
        %p287 = scmp.lt.s32.totalorder %s25, 7
        %s288 = scalar_select %p287, %s25, 7
        %s289 = smul.addr %s288, 16
        %s290 = smul.addr %s289, 8
        %s291 = scalar_lea.vmem %s2, %s290
        %p292 = pneg %p105
        %p293 = pneg %p102
        %p294 = scmp.lt.s32.totalorder %s25, 7
        %s295 = scalar_select %p294, %s25, 7
        %s296 = smul.addr %s295, 16
        %s297 = smul.addr %s296, 8
        %s298 = scalar_lea.vmem %s3, %s297
        %p299 = pneg %p131
        %p300 = pneg %p128
        %p301 = scmp.lt.s32.totalorder %s25, 7
        %s302 = scalar_select %p301, %s25, 7
        %s303 = smul.addr %s302, 8
        %s304 = smul.addr %s303, 8
        %s305 = scalar_lea.vmem %s4, %s304
        %p306 = pneg %p157
        %p307 = pneg %p154
        %p308 = pneg %p178
        %p309 = pneg %p175
        %p310 = pneg %p204
        %p311 = pneg %p201
        %s312 = sand.u32 %s191, 1
        %s313 = scalar_lea.sflag [#allocation4], %s312
        %s314 = sand.u32 %s191, 1
        %s315 = smul.addr %s314, 128
        %s316 = scalar_lea.vmem [#allocation3], %s315
        %p317 = scmp.lt.s32.totalorder %s24, 1
        %s318 = scalar_select %p317, %s24, 1
        %s319 = smul.addr %s318, 16
        %s320 = smul.addr %s319, 8
        %s321 = scalar_lea.vmem %s0, %s320
        %p322 = scmp.lt.s32.totalorder %s25, 7
        %s323 = scalar_select %p322, %s25, 7
        %s324 = smul.addr %s323, 16
        %s325 = smul.addr %s324, 8
        %s326 = scalar_lea.vmem %s1, %s325
        %p327 = scmp.lt.s32.totalorder %s25, 7
        %s328 = scalar_select %p327, %s25, 7
        %s329 = smul.addr %s328, 16
        %s330 = smul.addr %s329, 8
        %s331 = scalar_lea.vmem %s2, %s330
        %p332 = scmp.lt.s32.totalorder %s25, 7
        %s333 = scalar_select %p332, %s25, 7
        %s334 = smul.addr %s333, 16
        %s335 = smul.addr %s334, 8
        %s336 = scalar_lea.vmem %s3, %s335
        %p337 = scmp.lt.s32.totalorder %s25, 7
        %s338 = scalar_select %p337, %s25, 7
        %s339 = smul.addr %s338, 8
        %s340 = smul.addr %s339, 8
        %s341 = scalar_lea.vmem %s4, %s340
        %p343 = scmp.eq.s32.totalorder %s25, 0
        // Predicated region
        $region45: #{tpu_custom_call.1} parent=43 // pred_check
          %p344 = pneg %p343
        $region46: #{tpu_custom_call.1} parent=43 // pred_check_branch
          %346 = sbr.rel (%p344) target = $region48
        $region47: #{tpu_custom_call.1} parent=43 // pred_region
          %347 = vst [vmem:[#allocation2] sm:$0xff] 0.0
          %348 = vst [vmem:[#allocation2 + $0x8] sm:$0xff] 0.0
          %349 = vst [vmem:[#allocation2 + $0x10] sm:$0xff] 0.0
          %350 = vst [vmem:[#allocation2 + $0x18] sm:$0xff] 0.0
          %351 = vst [vmem:[#allocation2 + $0x20] sm:$0xff] 0.0
          %352 = vst [vmem:[#allocation2 + $0x28] sm:$0xff] 0.0
          %353 = vst [vmem:[#allocation2 + $0x30] sm:$0xff] 0.0
          %354 = vst [vmem:[#allocation2 + $0x38] sm:$0xff] 0.0
          %355 = vst [vmem:[#allocation2 + $0x40] sm:$0xff] 0.0
          %356 = vst [vmem:[#allocation2 + $0x48] sm:$0xff] 0.0
          %357 = vst [vmem:[#allocation2 + $0x50] sm:$0xff] 0.0
          %358 = vst [vmem:[#allocation2 + $0x58] sm:$0xff] 0.0
          %359 = vst [vmem:[#allocation2 + $0x60] sm:$0xff] 0.0
          %360 = vst [vmem:[#allocation2 + $0x68] sm:$0xff] 0.0
          %361 = vst [vmem:[#allocation2 + $0x70] sm:$0xff] 0.0
          %362 = vst [vmem:[#allocation2 + $0x78] sm:$0xff] 0.0
        $region48: #{tpu_custom_call.1} parent=43 // pred_fallthru
          _
        %v363 = vld [vmem:[%s321] sm:$0xff]
        %v364 = vld [vmem:[%s321 + $0x8] sm:$0xff]
        %v365 = vld [vmem:[%s321 + $0x10] sm:$0xff]
        %v366 = vld [vmem:[%s321 + $0x18] sm:$0xff]
        %v367 = vld [vmem:[%s321 + $0x20] sm:$0xff]
        %v368 = vld [vmem:[%s321 + $0x28] sm:$0xff]
        %v369 = vld [vmem:[%s321 + $0x30] sm:$0xff]
        %v370 = vld [vmem:[%s321 + $0x38] sm:$0xff]
        %v371 = vld [vmem:[%s321 + $0x40] sm:$0xff]
        %v372 = vld [vmem:[%s321 + $0x48] sm:$0xff]
        %v373 = vld [vmem:[%s321 + $0x50] sm:$0xff]
        %v374 = vld [vmem:[%s321 + $0x58] sm:$0xff]
        %v375 = vld [vmem:[%s321 + $0x60] sm:$0xff]
        %v376 = vld [vmem:[%s321 + $0x68] sm:$0xff]
        %v377 = vld [vmem:[%s321 + $0x70] sm:$0xff]
        %v378 = vld [vmem:[%s321 + $0x78] sm:$0xff]
        %v379 = vpack.c.bf16 %v364, %v363
        %v380 = vpack.c.bf16 %v366, %v365
        %v381 = vpack.c.bf16 %v368, %v367
        %v382 = vpack.c.bf16 %v370, %v369
        %v383 = vpack.c.bf16 %v372, %v371
        %v384 = vpack.c.bf16 %v374, %v373
        %v385 = vpack.c.bf16 %v376, %v375
        %v386 = vpack.c.bf16 %v378, %v377
        %v387 = vld [vmem:[%s326] sm:$0xff]
        %v388 = vld [vmem:[%s326 + $0x8] sm:$0xff]
        %v389 = vld [vmem:[%s326 + $0x10] sm:$0xff]
        %v390 = vld [vmem:[%s326 + $0x18] sm:$0xff]
        %v391 = vld [vmem:[%s326 + $0x20] sm:$0xff]
        %v392 = vld [vmem:[%s326 + $0x28] sm:$0xff]
        %v393 = vld [vmem:[%s326 + $0x30] sm:$0xff]
        %v394 = vld [vmem:[%s326 + $0x38] sm:$0xff]
        %v395 = vld [vmem:[%s326 + $0x40] sm:$0xff]
        %v396 = vld [vmem:[%s326 + $0x48] sm:$0xff]
        %v397 = vld [vmem:[%s326 + $0x50] sm:$0xff]
        %v398 = vld [vmem:[%s326 + $0x58] sm:$0xff]
        %v399 = vld [vmem:[%s326 + $0x60] sm:$0xff]
        %v400 = vld [vmem:[%s326 + $0x68] sm:$0xff]
        %v401 = vld [vmem:[%s326 + $0x70] sm:$0xff]
        %v402 = vld [vmem:[%s326 + $0x78] sm:$0xff]
        %v403 = vpack.c.bf16 %v388, %v387
        %v404 = vpack.c.bf16 %v390, %v389
        %v405 = vpack.c.bf16 %v392, %v391
        %v406 = vpack.c.bf16 %v394, %v393
        %v407 = vpack.c.bf16 %v396, %v395
        %v408 = vpack.c.bf16 %v398, %v397
        %v409 = vpack.c.bf16 %v400, %v399
        %v410 = vpack.c.bf16 %v402, %v401
        %v411 = vld [vmem:[%s331] sm:$0xff]
        %v412 = vld [vmem:[%s331 + $0x8] sm:$0xff]
        %v413 = vld [vmem:[%s331 + $0x10] sm:$0xff]
        %v414 = vld [vmem:[%s331 + $0x18] sm:$0xff]
        %v415 = vld [vmem:[%s331 + $0x20] sm:$0xff]
        %v416 = vld [vmem:[%s331 + $0x28] sm:$0xff]
        %v417 = vld [vmem:[%s331 + $0x30] sm:$0xff]
        %v418 = vld [vmem:[%s331 + $0x38] sm:$0xff]
        %v419 = vld [vmem:[%s331 + $0x40] sm:$0xff]
        %v420 = vld [vmem:[%s331 + $0x48] sm:$0xff]
        %v421 = vld [vmem:[%s331 + $0x50] sm:$0xff]
        %v422 = vld [vmem:[%s331 + $0x58] sm:$0xff]
        %v423 = vld [vmem:[%s331 + $0x60] sm:$0xff]
        %v424 = vld [vmem:[%s331 + $0x68] sm:$0xff]
        %v425 = vld [vmem:[%s331 + $0x70] sm:$0xff]
        %v426 = vld [vmem:[%s331 + $0x78] sm:$0xff]
        %v427 = vpack.c.bf16 %v412, %v411
        %v428 = vpack.c.bf16 %v414, %v413
        %v429 = vpack.c.bf16 %v416, %v415
        %v430 = vpack.c.bf16 %v418, %v417
        %v431 = vpack.c.bf16 %v420, %v419
        %v432 = vpack.c.bf16 %v422, %v421
        %v433 = vpack.c.bf16 %v424, %v423
        %v434 = vpack.c.bf16 %v426, %v425
        %v435 = vld [vmem:[%s336] sm:$0xff]
        %v436 = vld [vmem:[%s336 + $0x8] sm:$0xff]
        %v437 = vld [vmem:[%s336 + $0x10] sm:$0xff]
        %v438 = vld [vmem:[%s336 + $0x18] sm:$0xff]
        %v439 = vld [vmem:[%s336 + $0x20] sm:$0xff]
        %v440 = vld [vmem:[%s336 + $0x28] sm:$0xff]
        %v441 = vld [vmem:[%s336 + $0x30] sm:$0xff]
        %v442 = vld [vmem:[%s336 + $0x38] sm:$0xff]
        %v443 = vld [vmem:[%s336 + $0x40] sm:$0xff]
        %v444 = vld [vmem:[%s336 + $0x48] sm:$0xff]
        %v445 = vld [vmem:[%s336 + $0x50] sm:$0xff]
        %v446 = vld [vmem:[%s336 + $0x58] sm:$0xff]
        %v447 = vld [vmem:[%s336 + $0x60] sm:$0xff]
        %v448 = vld [vmem:[%s336 + $0x68] sm:$0xff]
        %v449 = vld [vmem:[%s336 + $0x70] sm:$0xff]
        %v450 = vld [vmem:[%s336 + $0x78] sm:$0xff]
        %v451 = vpack.c.bf16 %v436, %v435
        %v452 = vpack.c.bf16 %v438, %v437
        %v453 = vpack.c.bf16 %v440, %v439
        %v454 = vpack.c.bf16 %v442, %v441
        %v455 = vpack.c.bf16 %v444, %v443
        %v456 = vpack.c.bf16 %v446, %v445
        %v457 = vpack.c.bf16 %v448, %v447
        %v458 = vpack.c.bf16 %v450, %v449
        %v459 = vld [vmem:[%s341] sm:$0xff]
        %v460 = vld [vmem:[%s341 + $0x8] sm:$0xff]
        %v461 = vld [vmem:[%s341 + $0x10] sm:$0xff]
        %v462 = vld [vmem:[%s341 + $0x18] sm:$0xff]
        %v463 = vld [vmem:[%s341 + $0x20] sm:$0xff]
        %v464 = vld [vmem:[%s341 + $0x28] sm:$0xff]
        %v465 = vld [vmem:[%s341 + $0x30] sm:$0xff]
        %v466 = vld [vmem:[%s341 + $0x38] sm:$0xff]
        %v467 = vpack.c.bf16 %v460, %v459
        %v468 = vpack.c.bf16 %v462, %v461
        %v469 = vpack.c.bf16 %v464, %v463
        %v470 = vpack.c.bf16 %v466, %v465
        %471 = vmatpush.bf16.msra.mxu0 %v410
        %472 = vmatpush.bf16.msra.mxu0 %v409
        %473 = vmatpush.bf16.msra.mxu0 %v408
        %474 = vmatpush.bf16.msra.mxu0 %v407
        %475 = vmatpush.bf16.msra.mxu0 %v406
        %476 = vmatpush.bf16.msra.mxu0 %v405
        %477 = vmatpush.bf16.msra.mxu0 %v404
        %478 = vmatpush.bf16.msra.mxu0 %v403
        %479 = vmatmul.bf16.gmra.mxu0 %v379
        %v480 = vpop.f32.mrf.mxu0
        %v481 = vadd.f32 0.0, %v480
        %v482 = vpop.f32.mrf.mxu0
        %v483 = vadd.f32 0.0, %v482
        %484 = vmatmul.bf16.gmra.mxu0 %v380
        %v485 = vpop.f32.mrf.mxu0
        %v486 = vadd.f32 0.0, %v485
        %v487 = vpop.f32.mrf.mxu0
        %v488 = vadd.f32 0.0, %v487
        %489 = vmatmul.bf16.gmra.mxu0 %v381
        %v490 = vpop.f32.mrf.mxu0
        %v491 = vadd.f32 0.0, %v490
        %v492 = vpop.f32.mrf.mxu0
        %v493 = vadd.f32 0.0, %v492
        %494 = vmatmul.bf16.gmra.mxu0 %v382
        %v495 = vpop.f32.mrf.mxu0
        %v496 = vadd.f32 0.0, %v495
        %v497 = vpop.f32.mrf.mxu0
        %v498 = vadd.f32 0.0, %v497
        %499 = vmatmul.bf16.gmra.mxu0 %v383
        %v500 = vpop.f32.mrf.mxu0
        %v501 = vadd.f32 0.0, %v500
        %v502 = vpop.f32.mrf.mxu0
        %v503 = vadd.f32 0.0, %v502
        %504 = vmatmul.bf16.gmra.mxu0 %v384
        %v505 = vpop.f32.mrf.mxu0
        %v506 = vadd.f32 0.0, %v505
        %v507 = vpop.f32.mrf.mxu0
        %v508 = vadd.f32 0.0, %v507
        %509 = vmatmul.bf16.gmra.mxu0 %v385
        %v510 = vpop.f32.mrf.mxu0
        %v511 = vadd.f32 0.0, %v510
        %v512 = vpop.f32.mrf.mxu0
        %v513 = vadd.f32 0.0, %v512
        %514 = vmatmul.bf16.gmra.mxu0 %v386
        %v515 = vpop.f32.mrf.mxu0
        %v516 = vadd.f32 0.0, %v515
        %v517 = vpop.f32.mrf.mxu0
        %v518 = vadd.f32 0.0, %v517
        %519 = vdwg.mxu0
        %520 = vmatpush.bf16.msra.mxu0 %v434
        %521 = vmatpush.bf16.msra.mxu0 %v433
        %522 = vmatpush.bf16.msra.mxu0 %v432
        %523 = vmatpush.bf16.msra.mxu0 %v431
        %524 = vmatpush.bf16.msra.mxu0 %v430
        %525 = vmatpush.bf16.msra.mxu0 %v429
        %526 = vmatpush.bf16.msra.mxu0 %v428
        %527 = vmatpush.bf16.msra.mxu0 %v427
        %528 = vmatmul.bf16.gmra.mxu0 %v379
        %v529 = vpop.f32.mrf.mxu0
        %v530 = vadd.f32 0.0, %v529
        %v531 = vpop.f32.mrf.mxu0
        %v532 = vadd.f32 0.0, %v531
        %533 = vmatmul.bf16.gmra.mxu0 %v380
        %v534 = vpop.f32.mrf.mxu0
        %v535 = vadd.f32 0.0, %v534
        %v536 = vpop.f32.mrf.mxu0
        %v537 = vadd.f32 0.0, %v536
        %538 = vmatmul.bf16.gmra.mxu0 %v381
        %v539 = vpop.f32.mrf.mxu0
        %v540 = vadd.f32 0.0, %v539
        %v541 = vpop.f32.mrf.mxu0
        %v542 = vadd.f32 0.0, %v541
        %543 = vmatmul.bf16.gmra.mxu0 %v382
        %v544 = vpop.f32.mrf.mxu0
        %v545 = vadd.f32 0.0, %v544
        %v546 = vpop.f32.mrf.mxu0
        %v547 = vadd.f32 0.0, %v546
        %548 = vmatmul.bf16.gmra.mxu0 %v383
        %v549 = vpop.f32.mrf.mxu0
        %v550 = vadd.f32 0.0, %v549
        %v551 = vpop.f32.mrf.mxu0
        %v552 = vadd.f32 0.0, %v551
        %553 = vmatmul.bf16.gmra.mxu0 %v384
        %v554 = vpop.f32.mrf.mxu0
        %v555 = vadd.f32 0.0, %v554
        %v556 = vpop.f32.mrf.mxu0
        %v557 = vadd.f32 0.0, %v556
        %558 = vmatmul.bf16.gmra.mxu0 %v385
        %v559 = vpop.f32.mrf.mxu0
        %v560 = vadd.f32 0.0, %v559
        %v561 = vpop.f32.mrf.mxu0
        %v562 = vadd.f32 0.0, %v561
        %563 = vmatmul.bf16.gmra.mxu0 %v386
        %v564 = vpop.f32.mrf.mxu0
        %v565 = vadd.f32 0.0, %v564
        %v566 = vpop.f32.mrf.mxu0
        %v567 = vadd.f32 0.0, %v566
        %568 = vdwg.mxu0
        %569 = vmatpush.bf16.msra.mxu0 %v458
        %570 = vmatpush.bf16.msra.mxu0 %v457
        %571 = vmatpush.bf16.msra.mxu0 %v456
        %572 = vmatpush.bf16.msra.mxu0 %v455
        %573 = vmatpush.bf16.msra.mxu0 %v454
        %574 = vmatpush.bf16.msra.mxu0 %v453
        %575 = vmatpush.bf16.msra.mxu0 %v452
        %576 = vmatpush.bf16.msra.mxu0 %v451
        %577 = vmatmul.bf16.gmra.mxu0 %v379
        %v578 = vpop.f32.mrf.mxu0
        %v579 = vadd.f32 0.0, %v578
        %v580 = vpop.f32.mrf.mxu0
        %v581 = vadd.f32 0.0, %v580
        %582 = vmatmul.bf16.gmra.mxu0 %v380
        %v583 = vpop.f32.mrf.mxu0
        %v584 = vadd.f32 0.0, %v583
        %v585 = vpop.f32.mrf.mxu0
        %v586 = vadd.f32 0.0, %v585
        %587 = vmatmul.bf16.gmra.mxu0 %v381
        %v588 = vpop.f32.mrf.mxu0
        %v589 = vadd.f32 0.0, %v588
        %v590 = vpop.f32.mrf.mxu0
        %v591 = vadd.f32 0.0, %v590
        %592 = vmatmul.bf16.gmra.mxu0 %v382
        %v593 = vpop.f32.mrf.mxu0
        %v594 = vadd.f32 0.0, %v593
        %v595 = vpop.f32.mrf.mxu0
        %v596 = vadd.f32 0.0, %v595
        %597 = vmatmul.bf16.gmra.mxu0 %v383
        %v598 = vpop.f32.mrf.mxu0
        %v599 = vadd.f32 0.0, %v598
        %v600 = vpop.f32.mrf.mxu0
        %v601 = vadd.f32 0.0, %v600
        %602 = vmatmul.bf16.gmra.mxu0 %v384
        %v603 = vpop.f32.mrf.mxu0
        %v604 = vadd.f32 0.0, %v603
        %v605 = vpop.f32.mrf.mxu0
        %v606 = vadd.f32 0.0, %v605
        %607 = vmatmul.bf16.gmra.mxu0 %v385
        %v608 = vpop.f32.mrf.mxu0
        %v609 = vadd.f32 0.0, %v608
        %v610 = vpop.f32.mrf.mxu0
        %v611 = vadd.f32 0.0, %v610
        %612 = vmatmul.bf16.gmra.mxu0 %v386
        %v613 = vpop.f32.mrf.mxu0
        %v614 = vadd.f32 0.0, %v613
        %v615 = vpop.f32.mrf.mxu0
        %v616 = vadd.f32 0.0, %v615
        %617 = vdwg.mxu0
        %v618 = vpack.c.bf16 %v483, %v481
        %v619 = vpack.c.bf16 %v488, %v486
        %v620 = vpack.c.bf16 %v493, %v491
        %v621 = vpack.c.bf16 %v498, %v496
        %v622 = vpack.c.bf16 %v503, %v501
        %v623 = vpack.c.bf16 %v508, %v506
        %v624 = vpack.c.bf16 %v513, %v511
        %v625 = vpack.c.bf16 %v518, %v516
        %v626 = vpack.c.bf16 %v532, %v530
        %v627 = vpack.c.bf16 %v537, %v535
        %v628 = vpack.c.bf16 %v542, %v540
        %v629 = vpack.c.bf16 %v547, %v545
        %v630 = vpack.c.bf16 %v552, %v550
        %v631 = vpack.c.bf16 %v557, %v555
        %v632 = vpack.c.bf16 %v562, %v560
        %v633 = vpack.c.bf16 %v567, %v565
        %vm634 = vcmask 523264
        %v636 = vsel %vm634, %v618, 0
        %v639 = vsel %vm634, %v619, 0
        %v642 = vsel %vm634, %v620, 0
        %v645 = vsel %vm634, %v621, 0
        %v648 = vsel %vm634, %v622, 0
        %v651 = vsel %vm634, %v623, 0
        %v654 = vsel %vm634, %v624, 0
        %v657 = vsel %vm634, %v625, 0
        %v660 = vsel %vm634, %v626, 0
        %v663 = vsel %vm634, %v627, 0
        %v666 = vsel %vm634, %v628, 0
        %v669 = vsel %vm634, %v629, 0
        %v672 = vsel %vm634, %v630, 0
        %v675 = vsel %vm634, %v631, 0
        %v678 = vsel %vm634, %v632, 0
        %v681 = vsel %vm634, %v633, 0
        %683 = vmatpush.bf16.xpose.msra.mxu0 %v681
        %684 = vmatpush.bf16.xpose.msra.mxu0 %v678
        %685 = vmatpush.bf16.xpose.msra.mxu0 %v675
        %686 = vmatpush.bf16.xpose.msra.mxu0 %v672
        %687 = vmatpush.bf16.xpose.msra.mxu0 %v669
        %688 = vmatpush.bf16.xpose.msra.mxu0 %v666
        %689 = vmatpush.bf16.xpose.msra.mxu0 %v663
        %690 = vmatpush.bf16.xpose.msra.mxu0 %v660
        %691 = vmatmul.bf16.gmra.mxu0 %v636
        %v692 = vpop.f32.mrf.mxu0
        %v693 = vadd.f32 0.0, %v692
        %v694 = vpop.f32.mrf.mxu0
        %v695 = vadd.f32 0.0, %v694
        %696 = vmatmul.bf16.gmra.mxu0 %v639
        %v697 = vpop.f32.mrf.mxu0
        %v698 = vadd.f32 0.0, %v697
        %v699 = vpop.f32.mrf.mxu0
        %v700 = vadd.f32 0.0, %v699
        %701 = vmatmul.bf16.gmra.mxu0 %v642
        %v702 = vpop.f32.mrf.mxu0
        %v703 = vadd.f32 0.0, %v702
        %v704 = vpop.f32.mrf.mxu0
        %v705 = vadd.f32 0.0, %v704
        %706 = vmatmul.bf16.gmra.mxu0 %v645
        %v707 = vpop.f32.mrf.mxu0
        %v708 = vadd.f32 0.0, %v707
        %v709 = vpop.f32.mrf.mxu0
        %v710 = vadd.f32 0.0, %v709
        %711 = vmatmul.bf16.gmra.mxu0 %v648
        %v712 = vpop.f32.mrf.mxu0
        %v713 = vadd.f32 0.0, %v712
        %v714 = vpop.f32.mrf.mxu0
        %v715 = vadd.f32 0.0, %v714
        %716 = vmatmul.bf16.gmra.mxu0 %v651
        %v717 = vpop.f32.mrf.mxu0
        %v718 = vadd.f32 0.0, %v717
        %v719 = vpop.f32.mrf.mxu0
        %v720 = vadd.f32 0.0, %v719
        %721 = vmatmul.bf16.gmra.mxu0 %v654
        %v722 = vpop.f32.mrf.mxu0
        %v723 = vadd.f32 0.0, %v722
        %v724 = vpop.f32.mrf.mxu0
        %v725 = vadd.f32 0.0, %v724
        %726 = vmatmul.bf16.gmra.mxu0 %v657
        %v727 = vpop.f32.mrf.mxu0
        %v728 = vadd.f32 0.0, %v727
        %v729 = vpop.f32.mrf.mxu0
        %v730 = vadd.f32 0.0, %v729
        %731 = vdwg.mxu0
        %v732 = vmul.f32 %v693, 0.125
        %v733 = vmul.f32 %v695, 0.125
        %v734 = vmul.f32 %v698, 0.125
        %v735 = vmul.f32 %v700, 0.125
        %v736 = vmul.f32 %v703, 0.125
        %v737 = vmul.f32 %v705, 0.125
        %v738 = vmul.f32 %v708, 0.125
        %v739 = vmul.f32 %v710, 0.125
        %v740 = vmul.f32 %v713, 0.125
        %v741 = vmul.f32 %v715, 0.125
        %v742 = vmul.f32 %v718, 0.125
        %v743 = vmul.f32 %v720, 0.125
        %v744 = vmul.f32 %v723, 0.125
        %v745 = vmul.f32 %v725, 0.125
        %v746 = vmul.f32 %v728, 0.125
        %v747 = vmul.f32 %v730, 0.125
        %748 = vmax.xlane.f32.xlu0 %v732
        %v749 = vpop.xlane.xlu0 %748
        %750 = vmax.xlane.f32.xlu0 %v733
        %v751 = vpop.xlane.xlu0 %750
        %752 = vmax.xlane.f32.xlu0 %v734
        %v753 = vpop.xlane.xlu0 %752
        %754 = vmax.xlane.f32.xlu0 %v735
        %v755 = vpop.xlane.xlu0 %754
        %756 = vmax.xlane.f32.xlu0 %v736
        %v757 = vpop.xlane.xlu0 %756
        %758 = vmax.xlane.f32.xlu0 %v737
        %v759 = vpop.xlane.xlu0 %758
        %760 = vmax.xlane.f32.xlu0 %v738
        %v761 = vpop.xlane.xlu0 %760
        %762 = vmax.xlane.f32.xlu0 %v739
        %v763 = vpop.xlane.xlu0 %762
        %764 = vmax.xlane.f32.xlu0 %v740
        %v765 = vpop.xlane.xlu0 %764
        %766 = vmax.xlane.f32.xlu0 %v741
        %v767 = vpop.xlane.xlu0 %766
        %768 = vmax.xlane.f32.xlu0 %v742
        %v769 = vpop.xlane.xlu0 %768
        %770 = vmax.xlane.f32.xlu0 %v743
        %v771 = vpop.xlane.xlu0 %770
        %772 = vmax.xlane.f32.xlu0 %v744
        %v773 = vpop.xlane.xlu0 %772
        %774 = vmax.xlane.f32.xlu0 %v745
        %v775 = vpop.xlane.xlu0 %774
        %776 = vmax.xlane.f32.xlu0 %v746
        %v777 = vpop.xlane.xlu0 %776
        %778 = vmax.xlane.f32.xlu0 %v747
        %v779 = vpop.xlane.xlu0 %778
        %v780 = vsub.f32 %v732, %v749
        %v781 = vsub.f32 %v733, %v751
        %v782 = vsub.f32 %v734, %v753
        %v783 = vsub.f32 %v735, %v755
        %v784 = vsub.f32 %v736, %v757
        %v785 = vsub.f32 %v737, %v759
        %v786 = vsub.f32 %v738, %v761
        %v787 = vsub.f32 %v739, %v763
        %v788 = vsub.f32 %v740, %v765
        %v789 = vsub.f32 %v741, %v767
        %v790 = vsub.f32 %v742, %v769
        %v791 = vsub.f32 %v743, %v771
        %v792 = vsub.f32 %v744, %v773
        %v793 = vsub.f32 %v745, %v775
        %v794 = vsub.f32 %v746, %v777
        %v795 = vsub.f32 %v747, %v779
        %v796 = vmul.f32 %v780, 1.442695
        %v797 = vpow.pop %v796
        %v798 = vmul.f32 %v781, 1.442695
        %v799 = vpow.pop %v798
        %v800 = vmul.f32 %v782, 1.442695
        %v801 = vpow.pop %v800
        %v802 = vmul.f32 %v783, 1.442695
        %v803 = vpow.pop %v802
        %v804 = vmul.f32 %v784, 1.442695
        %v805 = vpow.pop %v804
        %v806 = vmul.f32 %v785, 1.442695
        %v807 = vpow.pop %v806
        %v808 = vmul.f32 %v786, 1.442695
        %v809 = vpow.pop %v808
        %v810 = vmul.f32 %v787, 1.442695
        %v811 = vpow.pop %v810
        %v812 = vmul.f32 %v788, 1.442695
        %v813 = vpow.pop %v812
        %v814 = vmul.f32 %v789, 1.442695
        %v815 = vpow.pop %v814
        %v816 = vmul.f32 %v790, 1.442695
        %v817 = vpow.pop %v816
        %v818 = vmul.f32 %v791, 1.442695
        %v819 = vpow.pop %v818
        %v820 = vmul.f32 %v792, 1.442695
        %v821 = vpow.pop %v820
        %v822 = vmul.f32 %v793, 1.442695
        %v823 = vpow.pop %v822
        %v824 = vmul.f32 %v794, 1.442695
        %v825 = vpow.pop %v824
        %v826 = vmul.f32 %v795, 1.442695
        %v827 = vpow.pop %v826
        %828 = vadd.xlane.f32.xlu0 %v797
        %v829 = vpop.xlane.xlu0 %828
        %830 = vadd.xlane.f32.xlu0 %v799
        %v831 = vpop.xlane.xlu0 %830
        %832 = vadd.xlane.f32.xlu0 %v801
        %v833 = vpop.xlane.xlu0 %832
        %834 = vadd.xlane.f32.xlu0 %v803
        %v835 = vpop.xlane.xlu0 %834
        %836 = vadd.xlane.f32.xlu0 %v805
        %v837 = vpop.xlane.xlu0 %836
        %838 = vadd.xlane.f32.xlu0 %v807
        %v839 = vpop.xlane.xlu0 %838
        %840 = vadd.xlane.f32.xlu0 %v809
        %v841 = vpop.xlane.xlu0 %840
        %842 = vadd.xlane.f32.xlu0 %v811
        %v843 = vpop.xlane.xlu0 %842
        %844 = vadd.xlane.f32.xlu0 %v813
        %v845 = vpop.xlane.xlu0 %844
        %846 = vadd.xlane.f32.xlu0 %v815
        %v847 = vpop.xlane.xlu0 %846
        %848 = vadd.xlane.f32.xlu0 %v817
        %v849 = vpop.xlane.xlu0 %848
        %850 = vadd.xlane.f32.xlu0 %v819
        %v851 = vpop.xlane.xlu0 %850
        %852 = vadd.xlane.f32.xlu0 %v821
        %v853 = vpop.xlane.xlu0 %852
        %854 = vadd.xlane.f32.xlu0 %v823
        %v855 = vpop.xlane.xlu0 %854
        %856 = vadd.xlane.f32.xlu0 %v825
        %v857 = vpop.xlane.xlu0 %856
        %858 = vadd.xlane.f32.xlu0 %v827
        %v859 = vpop.xlane.xlu0 %858
        %v860 = vrcp.pop %v829
        %v861 = vrcp.pop %v831
        %v862 = vrcp.pop %v833
        %v863 = vrcp.pop %v835
        %v864 = vrcp.pop %v837
        %v865 = vrcp.pop %v839
        %v866 = vrcp.pop %v841
        %v867 = vrcp.pop %v843
        %v868 = vrcp.pop %v845
        %v869 = vrcp.pop %v847
        %v870 = vrcp.pop %v849
        %v871 = vrcp.pop %v851
        %v872 = vrcp.pop %v853
        %v873 = vrcp.pop %v855
        %v874 = vrcp.pop %v857
        %v875 = vrcp.pop %v859
        %v876 = vmul.f32 %v797, %v860
        %v877 = vmul.f32 %v799, %v861
        %v878 = vmul.f32 %v801, %v862
        %v879 = vmul.f32 %v803, %v863
        %v880 = vmul.f32 %v805, %v864
        %v881 = vmul.f32 %v807, %v865
        %v882 = vmul.f32 %v809, %v866
        %v883 = vmul.f32 %v811, %v867
        %v884 = vmul.f32 %v813, %v868
        %v885 = vmul.f32 %v815, %v869
        %v886 = vmul.f32 %v817, %v870
        %v887 = vmul.f32 %v819, %v871
        %v888 = vmul.f32 %v821, %v872
        %v889 = vmul.f32 %v823, %v873
        %v890 = vmul.f32 %v825, %v874
        %v891 = vmul.f32 %v827, %v875
        %v892 = vpack.c.bf16 %v877, %v876
        %v893 = vpack.c.bf16 %v879, %v878
        %v894 = vpack.c.bf16 %v881, %v880
        %v895 = vpack.c.bf16 %v883, %v882
        %v896 = vpack.c.bf16 %v885, %v884
        %v897 = vpack.c.bf16 %v887, %v886
        %v898 = vpack.c.bf16 %v889, %v888
        %v899 = vpack.c.bf16 %v891, %v890
        %v900 = vpack.c.bf16 %v581, %v579
        %v901 = vpack.c.bf16 %v586, %v584
        %v902 = vpack.c.bf16 %v591, %v589
        %v903 = vpack.c.bf16 %v596, %v594
        %v904 = vpack.c.bf16 %v601, %v599
        %v905 = vpack.c.bf16 %v606, %v604
        %v906 = vpack.c.bf16 %v611, %v609
        %v907 = vpack.c.bf16 %v616, %v614
        %908 = vmatpush.bf16.msra.mxu0 %v907
        %909 = vmatpush.bf16.msra.mxu0 %v906
        %910 = vmatpush.bf16.msra.mxu0 %v905
        %911 = vmatpush.bf16.msra.mxu0 %v904
        %912 = vmatpush.bf16.msra.mxu0 %v903
        %913 = vmatpush.bf16.msra.mxu0 %v902
        %914 = vmatpush.bf16.msra.mxu0 %v901
        %915 = vmatpush.bf16.msra.mxu0 %v900
        %916 = vmatmul.bf16.gmra.mxu0 %v892
        %v917 = vpop.f32.mrf.mxu0
        %v918 = vadd.f32 0.0, %v917
        %v919 = vpop.f32.mrf.mxu0
        %v920 = vadd.f32 0.0, %v919
        %921 = vmatmul.bf16.gmra.mxu0 %v893
        %v922 = vpop.f32.mrf.mxu0
        %v923 = vadd.f32 0.0, %v922
        %v924 = vpop.f32.mrf.mxu0
        %v925 = vadd.f32 0.0, %v924
        %926 = vmatmul.bf16.gmra.mxu0 %v894
        %v927 = vpop.f32.mrf.mxu0
        %v928 = vadd.f32 0.0, %v927
        %v929 = vpop.f32.mrf.mxu0
        %v930 = vadd.f32 0.0, %v929
        %931 = vmatmul.bf16.gmra.mxu0 %v895
        %v932 = vpop.f32.mrf.mxu0
        %v933 = vadd.f32 0.0, %v932
        %v934 = vpop.f32.mrf.mxu0
        %v935 = vadd.f32 0.0, %v934
        %936 = vmatmul.bf16.gmra.mxu0 %v896
        %v937 = vpop.f32.mrf.mxu0
        %v938 = vadd.f32 0.0, %v937
        %v939 = vpop.f32.mrf.mxu0
        %v940 = vadd.f32 0.0, %v939
        %941 = vmatmul.bf16.gmra.mxu0 %v897
        %v942 = vpop.f32.mrf.mxu0
        %v943 = vadd.f32 0.0, %v942
        %v944 = vpop.f32.mrf.mxu0
        %v945 = vadd.f32 0.0, %v944
        %946 = vmatmul.bf16.gmra.mxu0 %v898
        %v947 = vpop.f32.mrf.mxu0
        %v948 = vadd.f32 0.0, %v947
        %v949 = vpop.f32.mrf.mxu0
        %v950 = vadd.f32 0.0, %v949
        %951 = vmatmul.bf16.gmra.mxu0 %v899
        %v952 = vpop.f32.mrf.mxu0
        %v953 = vadd.f32 0.0, %v952
        %v954 = vpop.f32.mrf.mxu0
        %v955 = vadd.f32 0.0, %v954
        %956 = vdwg.mxu0
        %v957 = vld [vmem:[#allocation2] sm:$0xff]
        %v958 = vld [vmem:[#allocation2 + $0x8] sm:$0xff]
        %v959 = vld [vmem:[#allocation2 + $0x10] sm:$0xff]
        %v960 = vld [vmem:[#allocation2 + $0x18] sm:$0xff]
        %v961 = vld [vmem:[#allocation2 + $0x20] sm:$0xff]
        %v962 = vld [vmem:[#allocation2 + $0x28] sm:$0xff]
        %v963 = vld [vmem:[#allocation2 + $0x30] sm:$0xff]
        %v964 = vld [vmem:[#allocation2 + $0x38] sm:$0xff]
        %v965 = vld [vmem:[#allocation2 + $0x40] sm:$0xff]
        %v966 = vld [vmem:[#allocation2 + $0x48] sm:$0xff]
        %v967 = vld [vmem:[#allocation2 + $0x50] sm:$0xff]
        %v968 = vld [vmem:[#allocation2 + $0x58] sm:$0xff]
        %v969 = vld [vmem:[#allocation2 + $0x60] sm:$0xff]
        %v970 = vld [vmem:[#allocation2 + $0x68] sm:$0xff]
        %v971 = vld [vmem:[#allocation2 + $0x70] sm:$0xff]
        %v972 = vld [vmem:[#allocation2 + $0x78] sm:$0xff]
        %v973 = vpack.c.bf16 %v920, %v918
        %v974 = vpack.c.bf16 %v925, %v923
        %v975 = vpack.c.bf16 %v930, %v928
        %v976 = vpack.c.bf16 %v935, %v933
        %v977 = vpack.c.bf16 %v940, %v938
        %v978 = vpack.c.bf16 %v945, %v943
        %v979 = vpack.c.bf16 %v950, %v948
        %v980 = vpack.c.bf16 %v955, %v953
        %v982 = vsel %vm634, %v973, 0
        %v985 = vsel %vm634, %v974, 0
        %v988 = vsel %vm634, %v975, 0
        %v991 = vsel %vm634, %v976, 0
        %v994 = vsel %vm634, %v977, 0
        %v997 = vsel %vm634, %v978, 0
        %v1000 = vsel %vm634, %v979, 0
        %v1003 = vsel %vm634, %v980, 0
        %1005 = vmatpush.bf16.msra.mxu0 0
        %1006 = vmatpush.bf16.msra.mxu0 0
        %1007 = vmatpush.bf16.msra.mxu0 0
        %1008 = vmatpush.bf16.msra.mxu0 0
        %1009 = vmatpush.bf16.msra.mxu0 %v470
        %1010 = vmatpush.bf16.msra.mxu0 %v469
        %1011 = vmatpush.bf16.msra.mxu0 %v468
        %1012 = vmatpush.bf16.msra.mxu0 %v467
        %1013 = vmatmul.bf16.gmra.mxu0 %v982
        %v1014 = vpop.f32.mrf.mxu0
        %v1015 = vadd.f32 0.0, %v1014
        %v1016 = vpop.f32.mrf.mxu0
        %v1017 = vadd.f32 0.0, %v1016
        %1018 = vmatmul.bf16.gmra.mxu0 %v985
        %v1019 = vpop.f32.mrf.mxu0
        %v1020 = vadd.f32 0.0, %v1019
        %v1021 = vpop.f32.mrf.mxu0
        %v1022 = vadd.f32 0.0, %v1021
        %1023 = vmatmul.bf16.gmra.mxu0 %v988
        %v1024 = vpop.f32.mrf.mxu0
        %v1025 = vadd.f32 0.0, %v1024
        %v1026 = vpop.f32.mrf.mxu0
        %v1027 = vadd.f32 0.0, %v1026
        %1028 = vmatmul.bf16.gmra.mxu0 %v991
        %v1029 = vpop.f32.mrf.mxu0
        %v1030 = vadd.f32 0.0, %v1029
        %v1031 = vpop.f32.mrf.mxu0
        %v1032 = vadd.f32 0.0, %v1031
        %1033 = vmatmul.bf16.gmra.mxu0 %v994
        %v1034 = vpop.f32.mrf.mxu0
        %v1035 = vadd.f32 0.0, %v1034
        %v1036 = vpop.f32.mrf.mxu0
        %v1037 = vadd.f32 0.0, %v1036
        %1038 = vmatmul.bf16.gmra.mxu0 %v997
        %v1039 = vpop.f32.mrf.mxu0
        %v1040 = vadd.f32 0.0, %v1039
        %v1041 = vpop.f32.mrf.mxu0
        %v1042 = vadd.f32 0.0, %v1041
        %1043 = vmatmul.bf16.gmra.mxu0 %v1000
        %v1044 = vpop.f32.mrf.mxu0
        %v1045 = vadd.f32 0.0, %v1044
        %v1046 = vpop.f32.mrf.mxu0
        %v1047 = vadd.f32 0.0, %v1046
        %1048 = vmatmul.bf16.gmra.mxu0 %v1003
        %v1049 = vpop.f32.mrf.mxu0
        %v1050 = vadd.f32 0.0, %v1049
        %v1051 = vpop.f32.mrf.mxu0
        %v1052 = vadd.f32 0.0, %v1051
        %1053 = vdwg.mxu0
        %v1054 = vadd.f32 %v957, %v1015
        %v1055 = vadd.f32 %v958, %v1017
        %v1056 = vadd.f32 %v959, %v1020
        %v1057 = vadd.f32 %v960, %v1022
        %v1058 = vadd.f32 %v961, %v1025
        %v1059 = vadd.f32 %v962, %v1027
        %v1060 = vadd.f32 %v963, %v1030
        %v1061 = vadd.f32 %v964, %v1032
        %v1062 = vadd.f32 %v965, %v1035
        %v1063 = vadd.f32 %v966, %v1037
        %v1064 = vadd.f32 %v967, %v1040
        %v1065 = vadd.f32 %v968, %v1042
        %v1066 = vadd.f32 %v969, %v1045
        %v1067 = vadd.f32 %v970, %v1047
        %v1068 = vadd.f32 %v971, %v1050
        %v1069 = vadd.f32 %v972, %v1052
        %1070 = vst [vmem:[#allocation2] sm:$0xff] %v1054
        %1071 = vst [vmem:[#allocation2 + $0x8] sm:$0xff] %v1055
        %1072 = vst [vmem:[#allocation2 + $0x10] sm:$0xff] %v1056
        %1073 = vst [vmem:[#allocation2 + $0x18] sm:$0xff] %v1057
        %1074 = vst [vmem:[#allocation2 + $0x20] sm:$0xff] %v1058
        %1075 = vst [vmem:[#allocation2 + $0x28] sm:$0xff] %v1059
        %1076 = vst [vmem:[#allocation2 + $0x30] sm:$0xff] %v1060
        %1077 = vst [vmem:[#allocation2 + $0x38] sm:$0xff] %v1061
        %1078 = vst [vmem:[#allocation2 + $0x40] sm:$0xff] %v1062
        %1079 = vst [vmem:[#allocation2 + $0x48] sm:$0xff] %v1063
        %1080 = vst [vmem:[#allocation2 + $0x50] sm:$0xff] %v1064
        %1081 = vst [vmem:[#allocation2 + $0x58] sm:$0xff] %v1065
        %1082 = vst [vmem:[#allocation2 + $0x60] sm:$0xff] %v1066
        %1083 = vst [vmem:[#allocation2 + $0x68] sm:$0xff] %v1067
        %1084 = vst [vmem:[#allocation2 + $0x70] sm:$0xff] %v1068
        %1085 = vst [vmem:[#allocation2 + $0x78] sm:$0xff] %v1069
        %p1086 = scmp.eq.s32.totalorder %s25, 7
        // Predicated region
        $region49: #{tpu_custom_call.1} parent=43 // pred_check
          %p1087 = pneg %p1086
        $region50: #{tpu_custom_call.1} parent=43 // pred_check_branch
          %1089 = sbr.rel (%p1087) target = $region52
        $region51: #{tpu_custom_call.1} parent=43 // pred_region
          %v1090 = vld [vmem:[#allocation2] sm:$0xff]
          %v1091 = vld [vmem:[#allocation2 + $0x8] sm:$0xff]
          %v1092 = vld [vmem:[#allocation2 + $0x10] sm:$0xff]
          %v1093 = vld [vmem:[#allocation2 + $0x18] sm:$0xff]
          %v1094 = vld [vmem:[#allocation2 + $0x20] sm:$0xff]
          %v1095 = vld [vmem:[#allocation2 + $0x28] sm:$0xff]
          %v1096 = vld [vmem:[#allocation2 + $0x30] sm:$0xff]
          %v1097 = vld [vmem:[#allocation2 + $0x38] sm:$0xff]
          %v1098 = vld [vmem:[#allocation2 + $0x40] sm:$0xff]
          %v1099 = vld [vmem:[#allocation2 + $0x48] sm:$0xff]
          %v1100 = vld [vmem:[#allocation2 + $0x50] sm:$0xff]
          %v1101 = vld [vmem:[#allocation2 + $0x58] sm:$0xff]
          %v1102 = vld [vmem:[#allocation2 + $0x60] sm:$0xff]
          %v1103 = vld [vmem:[#allocation2 + $0x68] sm:$0xff]
          %v1104 = vld [vmem:[#allocation2 + $0x70] sm:$0xff]
          %v1105 = vld [vmem:[#allocation2 + $0x78] sm:$0xff]
          %v1106 = vld [vmem:[%s5] sm:$0x1]
          %v1108 = vperm.slane %v1106, 0
          %v1110 = vadd.f32 %v1090, %v1108
          %v1111 = vadd.f32 %v1091, %v1108
          %v1112 = vadd.f32 %v1092, %v1108
          %v1113 = vadd.f32 %v1093, %v1108
          %v1114 = vadd.f32 %v1094, %v1108
          %v1115 = vadd.f32 %v1095, %v1108
          %v1116 = vadd.f32 %v1096, %v1108
          %v1117 = vadd.f32 %v1097, %v1108
          %v1118 = vadd.f32 %v1098, %v1108
          %v1119 = vadd.f32 %v1099, %v1108
          %v1120 = vadd.f32 %v1100, %v1108
          %v1121 = vadd.f32 %v1101, %v1108
          %v1122 = vadd.f32 %v1102, %v1108
          %v1123 = vadd.f32 %v1103, %v1108
          %v1124 = vadd.f32 %v1104, %v1108
          %v1125 = vadd.f32 %v1105, %v1108
          %1126 = vst [vmem:[%s316] sm:$0xff] %v1110
          %1127 = vst [vmem:[%s316 + $0x8] sm:$0xff] %v1111
          %1128 = vst [vmem:[%s316 + $0x10] sm:$0xff] %v1112
          %1129 = vst [vmem:[%s316 + $0x18] sm:$0xff] %v1113
          %1130 = vst [vmem:[%s316 + $0x20] sm:$0xff] %v1114
          %1131 = vst [vmem:[%s316 + $0x28] sm:$0xff] %v1115
          %1132 = vst [vmem:[%s316 + $0x30] sm:$0xff] %v1116
          %1133 = vst [vmem:[%s316 + $0x38] sm:$0xff] %v1117
          %1134 = vst [vmem:[%s316 + $0x40] sm:$0xff] %v1118
          %1135 = vst [vmem:[%s316 + $0x48] sm:$0xff] %v1119
          %1136 = vst [vmem:[%s316 + $0x50] sm:$0xff] %v1120
          %1137 = vst [vmem:[%s316 + $0x58] sm:$0xff] %v1121
          %1138 = vst [vmem:[%s316 + $0x60] sm:$0xff] %v1122
          %1139 = vst [vmem:[%s316 + $0x68] sm:$0xff] %v1123
          %1140 = vst [vmem:[%s316 + $0x70] sm:$0xff] %v1124
          %1141 = vst [vmem:[%s316 + $0x78] sm:$0xff] %v1125
        $region52: #{tpu_custom_call.1} parent=43 // pred_fallthru
          _
        %s1142 = sand.u32 %s191, 1
        %s1143 = scalar_lea.sflag [#allocation4], %s1142
        %s1144 = sand.u32 %s191, 1
        %s1145 = smul.addr %s1144, 128
        %s1146 = scalar_lea.vmem [#allocation3], %s1145
        // Predicated region
        $region53: #{tpu_custom_call.1} parent=43 // pred_check
          %p1147 = pneg %p201
        $region54: #{tpu_custom_call.1} parent=43 // pred_check_branch
          %1149 = sbr.rel (%p1147) target = $region56
        $region55: #{tpu_custom_call.1} parent=43 // pred_region
          %1151 = vsyncadd %s1143, 0
          %s1152 = smul.addr %s24, 16
          %s1153 = smul.addr %s1152, 8
          %s1154 = scalar_lea.hbm %s6, %s1153
          %s1155 = sshll.u32 %s1146, 4
          %s1156 = int_to_ptr.vmem [resolvable:$true] %s1155
          %s1157 = sshll.u32 %s1154, 4
          %s1158 = int_to_ptr.hbm [resolvable:$true] %s1157
          %1163 = dma.vmem_to_hbm [thread:$0]  %s1156, 2048, %s1158, %s1143, 128, 128, 8
        $region56: #{tpu_custom_call.1} parent=43 // pred_fallthru
          _
      $region44: #{tpu_custom_call.1} parent=5 // pred_fallthru
        _
      %p1164 = scmp.le.s32.totalorder 2, %s15
      // Predicated region
      $region57: #{tpu_custom_call.1} parent=5 // pred_check
        %p1165 = pneg %p1164
      $region58: #{tpu_custom_call.1} parent=5 // pred_check_branch
        %1167 = sbr.rel (%p1165) target = $region60
      $region59: #{tpu_custom_call.1} parent=5 // pred_region
        %s1168 = ssub.s32 %s15, 2
        // Predicated region
        $region61: #{tpu_custom_call.1} parent=59 // pred_check
          %p1169 = pneg %p207
        $region62: #{tpu_custom_call.1} parent=59 // pred_check_branch
          %1171 = sbr.rel (%p1169) target = $region64
        $region63: #{tpu_custom_call.1} parent=59 // pred_region
          %s1172 = sand.u32 %s192, 1
          %s1173 = scalar_lea.sflag [#allocation4], %s1172
          %s1174 = sand.u32 %s192, 1
          %s1175 = smul.addr %s1174, 128
          %s1176 = scalar_lea.vmem [#allocation3], %s1175
          %1178 = dma.done %s1173, 2048
        $region64: #{tpu_custom_call.1} parent=59 // pred_fallthru
          _
      $region60: #{tpu_custom_call.1} parent=5 // pred_fallthru
        _
    $region6: #{tpu_custom_call.1} parent=1 // loop_footer
      %s19 = sadd.s32 1, %s15
    $region7: #{tpu_custom_call.1} parent=1 // loop_footer_branch
      %14 = sbr.rel target = $region3
    $region8: #{tpu_custom_call.1} parent=1 // loop_exit
      _
    %1179 = vsyncpa [#allocation4], 1
    %s1180 = scalar_lea.sflag [#allocation4], 1
    %1181 = vsyncpa %s1180, 1

</llo_original>
